<compile_context>
chip_gen: v6e
topology: v6e:2x2x1
jax: 0.10.0
libtpu: 0.0.40
codegen_flags: <defaults>
</compile_context>

<pallas_src>
import math
import numpy as np
import jax
import jax.numpy as jnp
from jax.experimental import pallas as pl
from jax.experimental.pallas import tpu as pltpu


def make_1d_gaussian(size, fwhm=3, center=None):
    x = np.arange(0, size, 1, dtype=float)
    if center is None:
        center = size // 2
    return np.exp(-4 * np.log(2) * (x - center) ** 2 / fwhm ** 2)


def _bilinear_gather_matrix(coords, size):
    """A[j, h] = max(0, 1 - |coords[j] - h|): exact bilinear gather matrix for
    align_corners=True pixel coords clamped to [0, size-1]."""
    idx = jnp.arange(size, dtype=jnp.float32)
    c = coords.astype(jnp.float32)
    return jnp.maximum(0.0, 1.0 - jnp.abs(c[:, None] - idx[None, :]))


def _vmem_limit_bytes(estimate):
    # >= the 32 MiB default scoped limit, but leave headroom under v7x's 64 MiB
    # physical VMEM (v5e/v6e have 128 MiB physical, so 64 MiB is safe there too).
    return int(min(max(int(estimate * 1.5), 32 * 1024 * 1024), 64 * 1024 * 1024))


# ------------- Pallas kernels: separable bilinear grid_sample ---------------
def _zoom_sample_packed(imgs_flat, a_y, a_xt, out_dtype, mxu_dtype):
    """Small-W path (W % 128 != 0, lcm(W,128) small): pack G = lcm(W,128)/W
    images per 128k-lane group inside the kernel and run lane-dense MXU
    matmuls.  No host-side layout passes."""
    NC, H, W = imgs_flat.shape
    LANE = (W * 128) // math.gcd(W, 128)            # lcm(W, 128)
    G = LANE // W                                   # images per lane group
    groups = pl.cdiv(NC, G)

    # lane-groups per grid step: amortize ~0.35us/step pipeline overhead,
    # keep >= 2 grid steps when NC allows (v7x megacore), bound unrolled copies.
    r = max(1, min(1024 // LANE, groups))
    if groups >= 2:
        r = max(1, min(r, groups // 2))
    r = max(1, min(r, max(1, 64 // G)))
    TB = r * G
    TBW = TB * W
    num_blocks = pl.cdiv(NC, TB)
    NC_pad = num_blocks * TB

    # Pre-cast to the MXU dtype in the wrapper (halves DMA bytes + input VMEM);
    # pad (if any) is done in the same dtype.
    x = imgs_flat.astype(mxu_dtype)
    if NC_pad != NC:
        x = jnp.pad(x, ((0, NC_pad - NC), (0, 0), (0, 0)))

    a_y_op = a_y.astype(mxu_dtype)                                      # (H, H)
    b_x_op = jnp.kron(jnp.eye(G, dtype=a_xt.dtype), a_xt).astype(mxu_dtype)  # (LANE, LANE)

    def kernel(a_y_ref, b_x_ref, img_ref, out_ref, slab_ref):
        # 1) pack (TB, H, W) -> (H, TB*W) lane-dense slab: tiny VMEM copies,
        #    hidden under the block DMA / MXU slack.
        for b in range(TB):
            slab_ref[:, b * W:(b + 1) * W] = img_ref[b]
        a_y_b = a_y_ref[...]
        b_x = b_x_ref[...]
        # 2) y-side: one lane-dense MXU matmul over all TB packed images.
        tmp = jnp.dot(a_y_b, slab_ref[...], preferred_element_type=jnp.float32)
        tmp = tmp.astype(b_x.dtype)
        # 3) x-side: loop LANE-wide windows against the small resident
        #    kron(I_G, A_x^T) block, unpacking each group straight into out_ref.
        for k in range(r):
            seg = tmp[:, k * LANE:(k + 1) * LANE]
            outk = jnp.dot(seg, b_x, preferred_element_type=jnp.float32)
            for g in range(G):
                out_ref[k * G + g] = outk[:, g * W:(g + 1) * W].astype(out_ref.dtype)

    esz = np.dtype(mxu_dtype).itemsize
    osz = np.dtype(out_dtype).itemsize
    est = (H * H * esz + LANE * LANE * esz                 # resident operands
           + 2 * TB * H * W * esz + 2 * TB * H * W * osz   # double-buffered in/out blocks
           + H * TBW * esz + H * TBW * 4)                  # slab scratch + f32 tmp
    flops = 2 * NC_pad * H * W * (H + LANE)
    bytes_accessed = NC_pad * H * W * (esz + osz) + H * H * esz + LANE * LANE * esz

    out = pl.pallas_call(
        kernel,
        out_shape=jax.ShapeDtypeStruct((NC_pad, H, W), out_dtype),
        grid=(num_blocks,),
        in_specs=[
            pl.BlockSpec((H, H), lambda i: (0, 0)),          # A_y          (resident)
            pl.BlockSpec((LANE, LANE), lambda i: (0, 0)),    # kron(I_G,A_x^T) (resident)
            pl.BlockSpec((TB, H, W), lambda i: (i, 0, 0)),   # image block
        ],
        out_specs=pl.BlockSpec((TB, H, W), lambda i: (i, 0, 0)),
        scratch_shapes=[pltpu.VMEM((H, TBW), mxu_dtype)],
        compiler_params=pltpu.CompilerParams(
            dimension_semantics=("parallel",),
            vmem_limit_bytes=_vmem_limit_bytes(est)),
        cost_estimate=pl.CostEstimate(flops=int(flops), transcendentals=0,
                                      bytes_accessed=int(bytes_accessed)),
    )(a_y_op, b_x_op, x)
    return out[:NC]


def _zoom_sample_per_image(imgs_flat, a_y, a_xt, out_dtype, mxu_dtype, tm_max=256):
    """W % 128 == 0 path (and fallback for awkward W): one image per grid step,
    row-tiled A_y for large H, no packing / layout passes at all."""
    NC, H, W = imgs_flat.shape
    TM = tm_max if (H % 8 == 0 and H > tm_max) else H
    n_ht = pl.cdiv(H, TM)

    x = imgs_flat.astype(mxu_dtype)          # pre-cast: halves DMA bytes + input VMEM
    a_y_op = a_y.astype(mxu_dtype)
    a_xt_op = a_xt.astype(mxu_dtype)

    def kernel(a_y_ref, a_xt_ref, img_ref, out_ref):
        tmp = jnp.dot(a_y_ref[...], img_ref[0], preferred_element_type=jnp.float32)
        tmp = tmp.astype(a_xt_ref.dtype)
        out_ref[0] = jnp.dot(tmp, a_xt_ref[...],
                             preferred_element_type=jnp.float32).astype(out_ref.dtype)

    esz = np.dtype(mxu_dtype).itemsize
    osz = np.dtype(out_dtype).itemsize
    est = (2 * TM * H * esz + W * W * esz
           + 2 * H * W * esz + 2 * TM * W * osz + TM * W * 4)
    flops = 2 * NC * H * W * (H + W)
    bytes_accessed = NC * H * W * (esz + osz) + H * H * esz + W * W * esz

    out = pl.pallas_call(
        kernel,
        out_shape=jax.ShapeDtypeStruct((NC, H, W), out_dtype),
        grid=(NC, n_ht),                                     # image block reused across row tiles
        in_specs=[
            pl.BlockSpec((TM, H), lambda b, t: (t, 0)),      # A_y row tile
            pl.BlockSpec((W, W), lambda b, t: (0, 0)),       # A_x^T (resident)
            pl.BlockSpec((1, H, W), lambda b, t: (b, 0, 0)), # whole image (DMA'd once per b)
        ],
        out_specs=pl.BlockSpec((1, TM, W), lambda b, t: (b, t, 0)),
        compiler_params=pltpu.CompilerParams(
            dimension_semantics=("parallel", "parallel"),
            vmem_limit_bytes=_vmem_limit_bytes(est)),
        cost_estimate=pl.CostEstimate(flops=int(flops), transcendentals=0,
                                      bytes_accessed=int(bytes_accessed)),
    )(a_y_op, a_xt_op, x)
    return out


def zoom_grid_sample(imgs, xs_img, ys_img, *, mxu_dtype=jnp.bfloat16):
    """Separable bilinear grid_sample: out[n,c] = A_y @ imgs[n,c] @ A_x^T.
    Reproduces F.grid_sample(mode='bilinear', align_corners=True,
    padding_mode='zeros') for the clamped LZU warp grid.
    Set mxu_dtype=jnp.float32 for bit-level parity tests (~1e-3 rel. err. in bf16)."""
    N, C, H, W = imgs.shape
    a_y = _bilinear_gather_matrix(ys_img, H)       # (H, H)
    a_xt = _bilinear_gather_matrix(xs_img, W).T    # (W, W), pre-transposed
    imgs_flat = imgs.reshape(N * C, H, W)          # free reshape, no transpose passes

    LANE = (W * 128) // math.gcd(W, 128)
    if W % 128 != 0 and LANE <= 512:
        out = _zoom_sample_packed(imgs_flat, a_y, a_xt, imgs.dtype, mxu_dtype)
    else:
        # TODO(synk): for W with a small gcd(W,128) at large H, add a row-tile
        # axis to this fallback too (it is correct, just lane-masked).
        out = _zoom_sample_per_image(imgs_flat, a_y, a_xt, imgs.dtype, mxu_dtype)
    return out.reshape(N, C, H, W)


def _reference_zoom_sample(imgs, xs_img, ys_img):
    """Pure-JAX f32 reference of the same separable grid_sample."""
    N, C, H, W = imgs.shape
    a_y = _bilinear_gather_matrix(ys_img, H)
    a_x = _bilinear_gather_matrix(xs_img, W)
    return jnp.einsum('jh,nchw,iw->ncji', a_y, imgs.astype(jnp.float32), a_x)


# ---------------- LZUTransform (separable) in JAX ---------------------------
class LZUTransformJAX:
    def __init__(self, output_shape, grid_shape=(9, 13), separable=True,
                 attraction_fwhm=13, anti_crop=True, seed=0,
                 mxu_dtype=jnp.bfloat16):
        assert separable, "only the separable (default) LZU path is implemented"
        self.output_shape = output_shape
        self.grid_shape = grid_shape
        self.padding_size = min(grid_shape) - 1
        self.total_shape = tuple(d + 2 * self.padding_size for d in grid_shape)
        self.pad_mode = 'reflect' if anti_crop else 'edge'
        self.mxu_dtype = mxu_dtype
        p = self.padding_size
        gh, gw = grid_shape
        self.filter = jnp.asarray(
            make_1d_gaussian(2 * p + 1, fwhm=attraction_fwhm), dtype=jnp.float32)
        self.P_basis_x = (jnp.arange(self.total_shape[1], dtype=jnp.float32) - p) / (gw - 1.0)
        self.P_basis_y = (jnp.arange(self.total_shape[0], dtype=jnp.float32) - p) / (gh - 1.0)
        # deterministic saliency_logit init (mirrors the module's __init__)
        key = jax.random.PRNGKey(seed)
        sal = jnp.ones(grid_shape, jnp.float32) + 0.01 * jax.random.normal(key, grid_shape)
        sal = sal / sal.sum()
        logit = jnp.log(sal)
        logit = logit - logit.mean()          # add _c = -mean(logit)
        self.saliency_logit = logit.reshape(1, 1, gh, gw)

    def get_saliency(self):
        s = jax.nn.softmax(self.saliency_logit.reshape(-1))
        return s.reshape(self.saliency_logit.shape)

    def _saliency_to_1d_grid(self, sal_1d, p_basis):
        # TODO(synk): this tiny (length ~grid_shape) 1-D gaussian conv / reflect
        # pad is glue done in plain JAX; the hot path (grid_sample) is Pallas.
        p = self.padding_size
        s_pad = jnp.pad(sal_1d, (p, p), mode=self.pad_mode)
        weights = jnp.correlate(s_pad, self.filter, mode='valid')            # F.conv1d
        w_off = jnp.correlate(p_basis * s_pad, self.filter, mode='valid')
        g = w_off / weights
        return jnp.clip(g * 2.0 - 1.0, -1.0, 1.0)

    @staticmethod
    def _interp1d_align_corners(vals, out_len):
        # 1-D slice of F.interpolate(mode='bilinear', align_corners=True),
        # valid because each grid channel is constant along the other axis.
        L = vals.shape[0]
        if out_len == 1:
            return vals[:1]
        src = jnp.arange(out_len, dtype=jnp.float32) * (L - 1) / (out_len - 1)
        i0 = jnp.clip(jnp.floor(src).astype(jnp.int32), 0, L - 2)
        frac = src - i0.astype(jnp.float32)
        return vals[i0] * (1.0 - frac) + vals[i0 + 1] * frac

    def _warp_1d(self):
        sal = self.get_saliency()[0, 0]                  # (gh, gw)
        xgrid = self._saliency_to_1d_grid(sal.sum(axis=0), self.P_basis_x)   # (gw,)
        ygrid = self._saliency_to_1d_grid(sal.sum(axis=1), self.P_basis_y)   # (gh,)
        return xgrid, ygrid

    def image_sample_coords(self, H, W):
        """Pixel-space per-axis sample coordinates of the upsampled warp grid."""
        xgrid, ygrid = self._warp_1d()
        xs_up = self._interp1d_align_corners(xgrid, W)   # (W,)
        ys_up = self._interp1d_align_corners(ygrid, H)   # (H,)
        xs_img = (xs_up + 1.0) * 0.5 * (W - 1)           # align_corners=True convention
        ys_img = (ys_up + 1.0) * 0.5 * (H - 1)
        return xs_img, ys_img

    def zoom(self, imgs):
        N, C, H, W = imgs.shape
        gh, gw = self.grid_shape
        xgrid, ygrid = self._warp_1d()
        # low-res warp grid returned by the reference module: (1, gh, gw, 2) = (x, y)
        grid = jnp.stack(
            (jnp.broadcast_to(xgrid[None, :], (gh, gw)),
             jnp.broadcast_to(ygrid[:, None], (gh, gw))), axis=-1)[None]
        xs_img, ys_img = self.image_sample_coords(H, W)
        imgs_zoom = zoom_grid_sample(imgs, xs_img, ys_img, mxu_dtype=self.mxu_dtype)
        return imgs_zoom, grid

    def __call__(self, imgs):
        # reference forward() raises NotImplementedError; zoom() is the
        # functional forward path of this module.
        # TODO(synk): unzoom() (data-dependent scatter inverse warp) is not implemented.
        return self.zoom(imgs)


if __name__ == "__main__":
    key = jax.random.PRNGKey(0)
    k1, k2 = jax.random.split(key)

    # Case 1: small W (W % 128 != 0) -> in-kernel lane-packed path.
    N, C, H, W = 2, 4, 16, 16
    imgs = jax.random.normal(k1, (N, C, H, W), dtype=jnp.float32)
    lzu = LZUTransformJAX(output_shape=(H, W), grid_shape=(9, 13), seed=0)
    imgs_zoom, grid = lzu(imgs)
    jax.block_until_ready((imgs_zoom, grid))
    assert imgs_zoom.shape == (N, C, H, W)
    assert grid.shape == (1, 9, 13, 2)
    assert bool(jnp.all(jnp.isfinite(imgs_zoom))) and bool(jnp.all(jnp.isfinite(grid)))
    xs_img, ys_img = lzu.image_sample_coords(H, W)
    ref = _reference_zoom_sample(imgs, xs_img, ys_img)
    assert bool(jnp.allclose(imgs_zoom, ref, atol=0.1, rtol=0.05)), "packed-path mismatch"

    # Case 2: W % 128 == 0 -> per-image (no-pack) lane-dense path.
    N2, C2, H2, W2 = 2, 2, 8, 128
    imgs2 = jax.random.normal(k2, (N2, C2, H2, W2), dtype=jnp.float32)
    lzu2 = LZUTransformJAX(output_shape=(H2, W2), grid_shape=(9, 13), seed=0)
    imgs_zoom2, grid2 = lzu2(imgs2)
    jax.block_until_ready((imgs_zoom2, grid2))
    assert imgs_zoom2.shape == (N2, C2, H2, W2)
    assert bool(jnp.all(jnp.isfinite(imgs_zoom2)))
    xs2, ys2 = lzu2.image_sample_coords(H2, W2)
    ref2 = _reference_zoom_sample(imgs2, xs2, ys2)
    assert bool(jnp.allclose(imgs_zoom2, ref2, atol=0.1, rtol=0.05)), "per-image-path mismatch"

    print("KERNEL_OK")
</pallas_src>

<mosaic_0001>
module attributes {stable_mosaic.version = 11 : i64} {
  func.func @kernel(%arg0: i32, %arg1: memref<16x16xbf16, #tpu.memory_space<vmem>>, %arg2: memref<128x128xbf16, #tpu.memory_space<vmem>>, %arg3: memref<8x16x16xbf16, #tpu.memory_space<vmem>>, %arg4: memref<8x16x16xf32, #tpu.memory_space<vmem>>, %arg5: memref<16x128xbf16, #tpu.memory_space<vmem>>) attributes {dimension_semantics = [#tpu.dimension_semantics<parallel>], iteration_bounds = array<i64: 1>, scalar_prefetch = 0 : i64, scratch_operands = 1 : i64, tpu.core_type = #tpu.core_type<tc>, window_params = [{pipeline_mode = #tpu.pipeline_mode<synchronous>, transform_indices = @transform_0, window_bounds = array<i64: 16, 16>}, {pipeline_mode = #tpu.pipeline_mode<synchronous>, transform_indices = @transform_1, window_bounds = array<i64: 128, 128>}, {transform_indices = @transform_2, window_bounds = array<i64: 8, 16, 16>}, {transform_indices = @transform_3, window_bounds = array<i64: 8, 16, 16>}]} {
    %c0 = arith.constant 0 : index
    %c0_0 = arith.constant 0 : index
    %c0_1 = arith.constant 0 : index
    %0 = vector.load %arg3[%c0, %c0_0, %c0_1] : memref<8x16x16xbf16, #tpu.memory_space<vmem>>, vector<1x16x16xbf16>
    %1 = vector.shape_cast %0 : vector<1x16x16xbf16> to vector<16x16xbf16>
    %c0_2 = arith.constant 0 : index
    %c0_3 = arith.constant 0 : index
    %2 = vector.load %arg5[%c0_2, %c0_3] : memref<16x128xbf16, #tpu.memory_space<vmem>>, vector<16x16xbf16>
    tpu.vector_store %arg5[%c0_2, %c0_3], %1 {strides = array<i32>} : memref<16x128xbf16, #tpu.memory_space<vmem>>, vector<16x16xbf16>,
    %c1 = arith.constant 1 : index
    %c0_4 = arith.constant 0 : index
    %c0_5 = arith.constant 0 : index
    %3 = vector.load %arg3[%c1, %c0_4, %c0_5] : memref<8x16x16xbf16, #tpu.memory_space<vmem>>, vector<1x16x16xbf16>
    %4 = vector.shape_cast %3 : vector<1x16x16xbf16> to vector<16x16xbf16>
    %c0_6 = arith.constant 0 : index
    %c16 = arith.constant 16 : index
    %5 = vector.load %arg5[%c0_6, %c16] : memref<16x128xbf16, #tpu.memory_space<vmem>>, vector<16x16xbf16>
    tpu.vector_store %arg5[%c0_6, %c16], %4 {strides = array<i32>} : memref<16x128xbf16, #tpu.memory_space<vmem>>, vector<16x16xbf16>,
    %c2 = arith.constant 2 : index
    %c0_7 = arith.constant 0 : index
    %c0_8 = arith.constant 0 : index
    %6 = vector.load %arg3[%c2, %c0_7, %c0_8] : memref<8x16x16xbf16, #tpu.memory_space<vmem>>, vector<1x16x16xbf16>
    %7 = vector.shape_cast %6 : vector<1x16x16xbf16> to vector<16x16xbf16>
    %c0_9 = arith.constant 0 : index
    %c32 = arith.constant 32 : index
    %8 = vector.load %arg5[%c0_9, %c32] : memref<16x128xbf16, #tpu.memory_space<vmem>>, vector<16x16xbf16>
    tpu.vector_store %arg5[%c0_9, %c32], %7 {strides = array<i32>} : memref<16x128xbf16, #tpu.memory_space<vmem>>, vector<16x16xbf16>,
    %c3 = arith.constant 3 : index
    %c0_10 = arith.constant 0 : index
    %c0_11 = arith.constant 0 : index
    %9 = vector.load %arg3[%c3, %c0_10, %c0_11] : memref<8x16x16xbf16, #tpu.memory_space<vmem>>, vector<1x16x16xbf16>
    %10 = vector.shape_cast %9 : vector<1x16x16xbf16> to vector<16x16xbf16>
    %c0_12 = arith.constant 0 : index
    %c48 = arith.constant 48 : index
    %11 = vector.load %arg5[%c0_12, %c48] : memref<16x128xbf16, #tpu.memory_space<vmem>>, vector<16x16xbf16>
    tpu.vector_store %arg5[%c0_12, %c48], %10 {strides = array<i32>} : memref<16x128xbf16, #tpu.memory_space<vmem>>, vector<16x16xbf16>,
    %c4 = arith.constant 4 : index
    %c0_13 = arith.constant 0 : index
    %c0_14 = arith.constant 0 : index
    %12 = vector.load %arg3[%c4, %c0_13, %c0_14] : memref<8x16x16xbf16, #tpu.memory_space<vmem>>, vector<1x16x16xbf16>
    %13 = vector.shape_cast %12 : vector<1x16x16xbf16> to vector<16x16xbf16>
    %c0_15 = arith.constant 0 : index
    %c64 = arith.constant 64 : index
    %14 = vector.load %arg5[%c0_15, %c64] : memref<16x128xbf16, #tpu.memory_space<vmem>>, vector<16x16xbf16>
    tpu.vector_store %arg5[%c0_15, %c64], %13 {strides = array<i32>} : memref<16x128xbf16, #tpu.memory_space<vmem>>, vector<16x16xbf16>,
    %c5 = arith.constant 5 : index
    %c0_16 = arith.constant 0 : index
    %c0_17 = arith.constant 0 : index
    %15 = vector.load %arg3[%c5, %c0_16, %c0_17] : memref<8x16x16xbf16, #tpu.memory_space<vmem>>, vector<1x16x16xbf16>
    %16 = vector.shape_cast %15 : vector<1x16x16xbf16> to vector<16x16xbf16>
    %c0_18 = arith.constant 0 : index
    %c80 = arith.constant 80 : index
    %17 = vector.load %arg5[%c0_18, %c80] : memref<16x128xbf16, #tpu.memory_space<vmem>>, vector<16x16xbf16>
    tpu.vector_store %arg5[%c0_18, %c80], %16 {strides = array<i32>} : memref<16x128xbf16, #tpu.memory_space<vmem>>, vector<16x16xbf16>,
    %c6 = arith.constant 6 : index
    %c0_19 = arith.constant 0 : index
    %c0_20 = arith.constant 0 : index
    %18 = vector.load %arg3[%c6, %c0_19, %c0_20] : memref<8x16x16xbf16, #tpu.memory_space<vmem>>, vector<1x16x16xbf16>
    %19 = vector.shape_cast %18 : vector<1x16x16xbf16> to vector<16x16xbf16>
    %c0_21 = arith.constant 0 : index
    %c96 = arith.constant 96 : index
    %20 = vector.load %arg5[%c0_21, %c96] : memref<16x128xbf16, #tpu.memory_space<vmem>>, vector<16x16xbf16>
    tpu.vector_store %arg5[%c0_21, %c96], %19 {strides = array<i32>} : memref<16x128xbf16, #tpu.memory_space<vmem>>, vector<16x16xbf16>,
    %c7 = arith.constant 7 : index
    %c0_22 = arith.constant 0 : index
    %c0_23 = arith.constant 0 : index
    %21 = vector.load %arg3[%c7, %c0_22, %c0_23] : memref<8x16x16xbf16, #tpu.memory_space<vmem>>, vector<1x16x16xbf16>
    %22 = vector.shape_cast %21 : vector<1x16x16xbf16> to vector<16x16xbf16>
    %c0_24 = arith.constant 0 : index
    %c112 = arith.constant 112 : index
    %23 = vector.load %arg5[%c0_24, %c112] : memref<16x128xbf16, #tpu.memory_space<vmem>>, vector<16x16xbf16>
    tpu.vector_store %arg5[%c0_24, %c112], %22 {strides = array<i32>} : memref<16x128xbf16, #tpu.memory_space<vmem>>, vector<16x16xbf16>,
    %c0_25 = arith.constant 0 : index
    %c0_26 = arith.constant 0 : index
    %24 = vector.load %arg1[%c0_25, %c0_26] : memref<16x16xbf16, #tpu.memory_space<vmem>>, vector<16x16xbf16>
    %c0_27 = arith.constant 0 : index
    %c0_28 = arith.constant 0 : index
    %25 = vector.load %arg2[%c0_27, %c0_28] : memref<128x128xbf16, #tpu.memory_space<vmem>>, vector<128x128xbf16>
    %c0_29 = arith.constant 0 : index
    %c0_30 = arith.constant 0 : index
    %26 = vector.load %arg5[%c0_29, %c0_30] : memref<16x128xbf16, #tpu.memory_space<vmem>>, vector<16x128xbf16>
    %cst = arith.constant dense<0.000000e+00> : vector<16x128xf32>
    %27 = tpu.matmul %24, %26, %cst {dimension_numbers = #tpu.dot_dimension_numbers<[1], [0], [0], [1], [0, 0, 1, 1], [], []>} : vector<16x16xbf16>, vector<16x128xbf16>, vector<16x128xf32> -> vector<16x128xf32>
    %28 = arith.truncf %27 : vector<16x128xf32> to vector<16x128xbf16>
    %cst_31 = arith.constant dense<0.000000e+00> : vector<16x128xf32>
    %29 = tpu.matmul %28, %25, %cst_31 {dimension_numbers = #tpu.dot_dimension_numbers<[1], [0], [0], [1], [0, 0, 1, 1], [], []>} : vector<16x128xbf16>, vector<128x128xbf16>, vector<16x128xf32> -> vector<16x128xf32>
    %30 = vector.extract_strided_slice %29 {offsets = [0, 0], sizes = [16, 16], strides = [1, 1]} : vector<16x128xf32> to vector<16x16xf32>
    %c0_32 = arith.constant 0 : index
    %c0_33 = arith.constant 0 : index
    %c0_34 = arith.constant 0 : index
    %31 = vector.load %arg4[%c0_32, %c0_33, %c0_34] : memref<8x16x16xf32, #tpu.memory_space<vmem>>, vector<1x16x16xf32>
    %32 = vector.shape_cast %31 : vector<1x16x16xf32> to vector<16x16xf32>
    %33 = vector.shape_cast %30 : vector<16x16xf32> to vector<1x16x16xf32>
    tpu.vector_store %arg4[%c0_32, %c0_33, %c0_34], %33 {strides = array<i32>} : memref<8x16x16xf32, #tpu.memory_space<vmem>>, vector<1x16x16xf32>,
    %34 = vector.extract_strided_slice %29 {offsets = [0, 16], sizes = [16, 16], strides = [1, 1]} : vector<16x128xf32> to vector<16x16xf32>
    %c1_35 = arith.constant 1 : index
    %c0_36 = arith.constant 0 : index
    %c0_37 = arith.constant 0 : index
    %35 = vector.load %arg4[%c1_35, %c0_36, %c0_37] : memref<8x16x16xf32, #tpu.memory_space<vmem>>, vector<1x16x16xf32>
    %36 = vector.shape_cast %35 : vector<1x16x16xf32> to vector<16x16xf32>
    %37 = vector.shape_cast %34 : vector<16x16xf32> to vector<1x16x16xf32>
    tpu.vector_store %arg4[%c1_35, %c0_36, %c0_37], %37 {strides = array<i32>} : memref<8x16x16xf32, #tpu.memory_space<vmem>>, vector<1x16x16xf32>,
    %38 = vector.extract_strided_slice %29 {offsets = [0, 32], sizes = [16, 16], strides = [1, 1]} : vector<16x128xf32> to vector<16x16xf32>
    %c2_38 = arith.constant 2 : index
    %c0_39 = arith.constant 0 : index
    %c0_40 = arith.constant 0 : index
    %39 = vector.load %arg4[%c2_38, %c0_39, %c0_40] : memref<8x16x16xf32, #tpu.memory_space<vmem>>, vector<1x16x16xf32>
    %40 = vector.shape_cast %39 : vector<1x16x16xf32> to vector<16x16xf32>
    %41 = vector.shape_cast %38 : vector<16x16xf32> to vector<1x16x16xf32>
    tpu.vector_store %arg4[%c2_38, %c0_39, %c0_40], %41 {strides = array<i32>} : memref<8x16x16xf32, #tpu.memory_space<vmem>>, vector<1x16x16xf32>,
    %42 = vector.extract_strided_slice %29 {offsets = [0, 48], sizes = [16, 16], strides = [1, 1]} : vector<16x128xf32> to vector<16x16xf32>
    %c3_41 = arith.constant 3 : index
    %c0_42 = arith.constant 0 : index
    %c0_43 = arith.constant 0 : index
    %43 = vector.load %arg4[%c3_41, %c0_42, %c0_43] : memref<8x16x16xf32, #tpu.memory_space<vmem>>, vector<1x16x16xf32>
    %44 = vector.shape_cast %43 : vector<1x16x16xf32> to vector<16x16xf32>
    %45 = vector.shape_cast %42 : vector<16x16xf32> to vector<1x16x16xf32>
    tpu.vector_store %arg4[%c3_41, %c0_42, %c0_43], %45 {strides = array<i32>} : memref<8x16x16xf32, #tpu.memory_space<vmem>>, vector<1x16x16xf32>,
    %46 = vector.extract_strided_slice %29 {offsets = [0, 64], sizes = [16, 16], strides = [1, 1]} : vector<16x128xf32> to vector<16x16xf32>
    %c4_44 = arith.constant 4 : index
    %c0_45 = arith.constant 0 : index
    %c0_46 = arith.constant 0 : index
    %47 = vector.load %arg4[%c4_44, %c0_45, %c0_46] : memref<8x16x16xf32, #tpu.memory_space<vmem>>, vector<1x16x16xf32>
    %48 = vector.shape_cast %47 : vector<1x16x16xf32> to vector<16x16xf32>
    %49 = vector.shape_cast %46 : vector<16x16xf32> to vector<1x16x16xf32>
    tpu.vector_store %arg4[%c4_44, %c0_45, %c0_46], %49 {strides = array<i32>} : memref<8x16x16xf32, #tpu.memory_space<vmem>>, vector<1x16x16xf32>,
    %50 = vector.extract_strided_slice %29 {offsets = [0, 80], sizes = [16, 16], strides = [1, 1]} : vector<16x128xf32> to vector<16x16xf32>
    %c5_47 = arith.constant 5 : index
    %c0_48 = arith.constant 0 : index
    %c0_49 = arith.constant 0 : index
    %51 = vector.load %arg4[%c5_47, %c0_48, %c0_49] : memref<8x16x16xf32, #tpu.memory_space<vmem>>, vector<1x16x16xf32>
    %52 = vector.shape_cast %51 : vector<1x16x16xf32> to vector<16x16xf32>
    %53 = vector.shape_cast %50 : vector<16x16xf32> to vector<1x16x16xf32>
    tpu.vector_store %arg4[%c5_47, %c0_48, %c0_49], %53 {strides = array<i32>} : memref<8x16x16xf32, #tpu.memory_space<vmem>>, vector<1x16x16xf32>,
    %54 = vector.extract_strided_slice %29 {offsets = [0, 96], sizes = [16, 16], strides = [1, 1]} : vector<16x128xf32> to vector<16x16xf32>
    %c6_50 = arith.constant 6 : index
    %c0_51 = arith.constant 0 : index
    %c0_52 = arith.constant 0 : index
    %55 = vector.load %arg4[%c6_50, %c0_51, %c0_52] : memref<8x16x16xf32, #tpu.memory_space<vmem>>, vector<1x16x16xf32>
    %56 = vector.shape_cast %55 : vector<1x16x16xf32> to vector<16x16xf32>
    %57 = vector.shape_cast %54 : vector<16x16xf32> to vector<1x16x16xf32>
    tpu.vector_store %arg4[%c6_50, %c0_51, %c0_52], %57 {strides = array<i32>} : memref<8x16x16xf32, #tpu.memory_space<vmem>>, vector<1x16x16xf32>,
    %58 = vector.extract_strided_slice %29 {offsets = [0, 112], sizes = [16, 16], strides = [1, 1]} : vector<16x128xf32> to vector<16x16xf32>
    %c7_53 = arith.constant 7 : index
    %c0_54 = arith.constant 0 : index
    %c0_55 = arith.constant 0 : index
    %59 = vector.load %arg4[%c7_53, %c0_54, %c0_55] : memref<8x16x16xf32, #tpu.memory_space<vmem>>, vector<1x16x16xf32>
    %60 = vector.shape_cast %59 : vector<1x16x16xf32> to vector<16x16xf32>
    %61 = vector.shape_cast %58 : vector<16x16xf32> to vector<1x16x16xf32>
    tpu.vector_store %arg4[%c7_53, %c0_54, %c0_55], %61 {strides = array<i32>} : memref<8x16x16xf32, #tpu.memory_space<vmem>>, vector<1x16x16xf32>,
    return
  }
  func.func @transform_0(%arg0: i32) -> (i32, i32) {
    %c0_i32 = arith.constant 0 : i32
    %c0_i32_0 = arith.constant 0 : i32
    %c0_i32_1 = arith.constant 0 : i32
    return %c0_i32, %c0_i32_0 : i32, i32
  }
  func.func @transform_1(%arg0: i32) -> (i32, i32) {
    %c0_i32 = arith.constant 0 : i32
    %c0_i32_0 = arith.constant 0 : i32
    %c0_i32_1 = arith.constant 0 : i32
    return %c0_i32, %c0_i32_0 : i32, i32
  }
  func.func @transform_2(%arg0: i32) -> (i32, i32, i32) {
    %c0_i32 = arith.constant 0 : i32
    %c0_i32_0 = arith.constant 0 : i32
    %c0_i32_1 = arith.constant 0 : i32
    return %arg0, %c0_i32, %c0_i32_0 : i32, i32, i32
  }
  func.func @transform_3(%arg0: i32) -> (i32, i32, i32) {
    %c0_i32 = arith.constant 0 : i32
    %c0_i32_0 = arith.constant 0 : i32
    %c0_i32_1 = arith.constant 0 : i32
    return %arg0, %c0_i32, %c0_i32_0 : i32, i32, i32
  }
}

</mosaic_0001>

<llo_original>
// kernel: tpu_custom_call.1
$region0: #{tpu_custom_call.1}
  #allocation0 [shape = 'u32[]', space=smem, size = 0x4, offset = 0x4, fixed_abs, tag = 'smem constant byte address 0x4 - core index']
  #allocation1 [shape = 'u32[144,128]{1,0:T(1,128)}', space=vmem, size = 0x12000, scoped, tag = 'internal scratch']
  #allocation2 [shape = 'bf16[16,128]{1,0:T(8,128)(2,1)}', space=vmem, size = 0x1000, scoped, tag = 'scratch operand']
  %s0 = inlined_call_operand.hbm [shape: bf16[16,16], index: 0, kind: input, shape index: {}]
  %s1 = inlined_call_operand.hbm [shape: bf16[128,128], index: 1, kind: input, shape index: {}]
  %s2 = inlined_call_operand.hbm [shape: bf16[8,16,16], index: 2, kind: input, shape index: {}]
  %s3 = inlined_call_operand.hbm [shape: f32[8,16,16], index: 3, kind: output, shape index: {}]
  %s4 = sld [smem:[#allocation0]]
  $region34: #{tpu_custom_call.1} parent=0
    _
  %s6 = ssub.s32 1, %s4
  %s7 = scalar_select 0, %s6, %s4
  $region1: #{tpu_custom_call.1} parent=0
    #allocation3 [shape = 'u8[4096]{0}', space=vmem, size = 0x1000, scoped, tag = 'input window, operand 0, single buffered']
    #allocation4 [shape = 's32[1]{0}', space=sflag, size = 0x4, scoped, tag = 'scoped memory for tpu_custom_call.1']
    #allocation5 [shape = 's32[1]{0}', space=sflag, size = 0x4, scoped, tag = 'scoped memory for tpu_custom_call.1']
    #allocation6 [shape = 'u8[32768]{0}', space=vmem, size = 0x8000, scoped, tag = 'input window, operand 1, single buffered']
    #allocation7 [shape = 's32[1]{0}', space=sflag, size = 0x4, scoped, tag = 'scoped memory for tpu_custom_call.1']
    #allocation8 [shape = 'u8[32768]{0}', space=vmem, size = 0x8000, scoped, tag = 'input window, operand 2, single buffered']
    #allocation9 [shape = 'u8[65536]{0}', space=vmem, size = 0x10000, scoped, tag = 'output window, operand 0, single buffered']
    %8 = vsyncpa [#allocation4], 0
    %9 = vsyncpa [#allocation7], 0
    %10 = vsyncpa [#allocation5], 0
    // Predicated region
    $region2: #{tpu_custom_call.1} parent=1 // pred_check
      _
    $region3: #{tpu_custom_call.1} parent=1 // pred_check_branch
      %12 = sbr.rel (0) target = $region5
    $region4: #{tpu_custom_call.1} parent=1 // pred_region
      %s14 = ssub.s32 128, 128
      %15 = vsyncadd [#allocation4], %s14
      %s16 = sshll.u32 [#allocation3], 4
      %s17 = int_to_ptr.vmem [resolvable:$true] %s16
      %22 = dma.hbm_to_vmem [thread:$0]  %s0, 128, %s17, [#allocation4], 64, 64, 4
    $region5: #{tpu_custom_call.1} parent=1 // pred_fallthru
      _
    // Predicated region
    $region6: #{tpu_custom_call.1} parent=1 // pred_check
      _
    $region7: #{tpu_custom_call.1} parent=1 // pred_check_branch
      %24 = sbr.rel (0) target = $region9
    $region8: #{tpu_custom_call.1} parent=1 // pred_region
      %s26 = ssub.s32 1024, 1024
      %27 = vsyncadd [#allocation7], %s26
      %s28 = sshll.u32 [#allocation6], 4
      %s29 = int_to_ptr.vmem [resolvable:$true] %s28
      %34 = dma.hbm_to_vmem [thread:$0]  %s1, 1024, %s29, [#allocation7], 64, 64, 4
    $region9: #{tpu_custom_call.1} parent=1 // pred_fallthru
      _
    // Predicated region
    $region10: #{tpu_custom_call.1} parent=1 // pred_check
      _
    $region11: #{tpu_custom_call.1} parent=1 // pred_check_branch
      %36 = sbr.rel (0) target = $region13
    $region12: #{tpu_custom_call.1} parent=1 // pred_region
      %s38 = ssub.s32 1024, 1024
      %39 = vsyncadd [#allocation7], %s38
      %s40 = sshll.u32 [#allocation8], 4
      %s41 = int_to_ptr.vmem [resolvable:$true] %s40
      %46 = dma.hbm_to_vmem [thread:$0]  %s2, 1024, %s41, [#allocation7], 64, 64, 4
    $region13: #{tpu_custom_call.1} parent=1 // pred_fallthru
      _
    // Predicated region
    $region14: #{tpu_custom_call.1} parent=1 // pred_check
      _
    $region15: #{tpu_custom_call.1} parent=1 // pred_check_branch
      %48 = sbr.rel (0) target = $region17
    $region16: #{tpu_custom_call.1} parent=1 // pred_region
      %49 = dma.done [#allocation4], 128
    $region17: #{tpu_custom_call.1} parent=1 // pred_fallthru
      _
    // Predicated region
    $region18: #{tpu_custom_call.1} parent=1 // pred_check
      _
    $region19: #{tpu_custom_call.1} parent=1 // pred_check_branch
      %51 = sbr.rel (0) target = $region21
    $region20: #{tpu_custom_call.1} parent=1 // pred_region
      %52 = dma.done [#allocation7], 1024
    $region21: #{tpu_custom_call.1} parent=1 // pred_fallthru
      _
    // Predicated region
    $region22: #{tpu_custom_call.1} parent=1 // pred_check
      _
    $region23: #{tpu_custom_call.1} parent=1 // pred_check_branch
      %54 = sbr.rel (0) target = $region25
    $region24: #{tpu_custom_call.1} parent=1 // pred_region
      %55 = dma.done [#allocation7], 1024
    $region25: #{tpu_custom_call.1} parent=1 // pred_fallthru
      _
    %v57 = vld [vmem:[#allocation8] sm:$0xf]
    %v58 = vld [vmem:[#allocation8 + $0x4] sm:$0xf]
    %vm59 = vcmask 125952
    %60 = vst.msk [vmem:[#allocation2] sm:$0xf] %vm59, %v57
    %61 = vst.msk [vmem:[#allocation2 + $0x4] sm:$0xf] %vm59, %v58
    %s62 = scalar_lea.vmem [#allocation8], 8
    %v63 = vld [vmem:[%s62] sm:$0xf]
    %v64 = vld [vmem:[%s62 + $0x4] sm:$0xf]
    %67 = vrot.lane.b32.xlu0 %v63, 16
    %v68 = vpop.permute.xlu0 %67
    %69 = vrot.lane.b32.xlu0 %v64, 16
    %v70 = vpop.permute.xlu0 %69
    %vm73 = vcmask 257152
    %74 = vst.msk [vmem:[#allocation2] sm:$0xf] %vm73, %v68
    %75 = vst.msk [vmem:[#allocation2 + $0x4] sm:$0xf] %vm73, %v70
    %s76 = scalar_lea.vmem [#allocation8], 16
    %v77 = vld [vmem:[%s76] sm:$0xf]
    %v78 = vld [vmem:[%s76 + $0x4] sm:$0xf]
    %81 = vrot.lane.b32.xlu0 %v77, 32
    %v82 = vpop.permute.xlu0 %81
    %83 = vrot.lane.b32.xlu0 %v78, 32
    %v84 = vpop.permute.xlu0 %83
    %vm87 = vcmask 388352
    %88 = vst.msk [vmem:[#allocation2] sm:$0xf] %vm87, %v82
    %89 = vst.msk [vmem:[#allocation2 + $0x4] sm:$0xf] %vm87, %v84
    %s90 = scalar_lea.vmem [#allocation8], 24
    %v91 = vld [vmem:[%s90] sm:$0xf]
    %v92 = vld [vmem:[%s90 + $0x4] sm:$0xf]
    %95 = vrot.lane.b32.xlu0 %v91, 48
    %v96 = vpop.permute.xlu0 %95
    %97 = vrot.lane.b32.xlu0 %v92, 48
    %v98 = vpop.permute.xlu0 %97
    %vm101 = vcmask 519552
    %102 = vst.msk [vmem:[#allocation2] sm:$0xf] %vm101, %v96
    %103 = vst.msk [vmem:[#allocation2 + $0x4] sm:$0xf] %vm101, %v98
    %s104 = scalar_lea.vmem [#allocation8], 32
    %v105 = vld [vmem:[%s104] sm:$0xf]
    %v106 = vld [vmem:[%s104 + $0x4] sm:$0xf]
    %109 = vrot.lane.b32.xlu0 %v105, 64
    %v110 = vpop.permute.xlu0 %109
    %111 = vrot.lane.b32.xlu0 %v106, 64
    %v112 = vpop.permute.xlu0 %111
    %vm115 = vcmask 650752
    %116 = vst.msk [vmem:[#allocation2] sm:$0xf] %vm115, %v110
    %117 = vst.msk [vmem:[#allocation2 + $0x4] sm:$0xf] %vm115, %v112
    %s118 = scalar_lea.vmem [#allocation8], 40
    %v119 = vld [vmem:[%s118] sm:$0xf]
    %v120 = vld [vmem:[%s118 + $0x4] sm:$0xf]
    %123 = vrot.lane.b32.xlu0 %v119, 80
    %v124 = vpop.permute.xlu0 %123
    %125 = vrot.lane.b32.xlu0 %v120, 80
    %v126 = vpop.permute.xlu0 %125
    %vm129 = vcmask 781952
    %130 = vst.msk [vmem:[#allocation2] sm:$0xf] %vm129, %v124
    %131 = vst.msk [vmem:[#allocation2 + $0x4] sm:$0xf] %vm129, %v126
    %s132 = scalar_lea.vmem [#allocation8], 48
    %v133 = vld [vmem:[%s132] sm:$0xf]
    %v134 = vld [vmem:[%s132 + $0x4] sm:$0xf]
    %137 = vrot.lane.b32.xlu0 %v133, 96
    %v138 = vpop.permute.xlu0 %137
    %139 = vrot.lane.b32.xlu0 %v134, 96
    %v140 = vpop.permute.xlu0 %139
    %vm143 = vcmask 913152
    %144 = vst.msk [vmem:[#allocation2] sm:$0xf] %vm143, %v138
    %145 = vst.msk [vmem:[#allocation2 + $0x4] sm:$0xf] %vm143, %v140
    %s146 = scalar_lea.vmem [#allocation8], 56
    %v147 = vld [vmem:[%s146] sm:$0xf]
    %v148 = vld [vmem:[%s146 + $0x4] sm:$0xf]
    %151 = vrot.lane.b32.xlu0 %v147, 112
    %v152 = vpop.permute.xlu0 %151
    %153 = vrot.lane.b32.xlu0 %v148, 112
    %v154 = vpop.permute.xlu0 %153
    %vm157 = vcmask 1044352
    %158 = vst.msk [vmem:[#allocation2] sm:$0xf] %vm157, %v152
    %159 = vst.msk [vmem:[#allocation2 + $0x4] sm:$0xf] %vm157, %v154
    %v160 = vld [vmem:[#allocation3] sm:$0xf]
    %v161 = vld [vmem:[#allocation3 + $0x4] sm:$0xf]
    %v162 = vld [vmem:[#allocation6] sm:$0xf]
    %v163 = vld [vmem:[#allocation6 + $0x4] sm:$0xf]
    %v164 = vld [vmem:[#allocation6 + $0x8] sm:$0xf]
    %v165 = vld [vmem:[#allocation6 + $0xc] sm:$0xf]
    %v166 = vld [vmem:[#allocation6 + $0x10] sm:$0xf]
    %v167 = vld [vmem:[#allocation6 + $0x14] sm:$0xf]
    %v168 = vld [vmem:[#allocation6 + $0x18] sm:$0xf]
    %v169 = vld [vmem:[#allocation6 + $0x1c] sm:$0xf]
    %v170 = vld [vmem:[#allocation6 + $0x20] sm:$0xf]
    %v171 = vld [vmem:[#allocation6 + $0x24] sm:$0xf]
    %v172 = vld [vmem:[#allocation6 + $0x28] sm:$0xf]
    %v173 = vld [vmem:[#allocation6 + $0x2c] sm:$0xf]
    %v174 = vld [vmem:[#allocation6 + $0x30] sm:$0xf]
    %v175 = vld [vmem:[#allocation6 + $0x34] sm:$0xf]
    %v176 = vld [vmem:[#allocation6 + $0x38] sm:$0xf]
    %v177 = vld [vmem:[#allocation6 + $0x3c] sm:$0xf]
    %v178 = vld [vmem:[#allocation2] sm:$0xf]
    %v179 = vld [vmem:[#allocation2 + $0x4] sm:$0xf]
    %v182 = vunpack.c.l.b16 %v160
    %v183 = vunpack.c.l.b16 %v161
    %v184 = vpack.c.b16 %v183, %v182
    %v187 = vunpack.c.l.b16 %v178
    %v188 = vunpack.c.l.b16 %v179
    %v189 = vpack.c.b16 %v188, %v187
    %vm191 = vcmask 130048
    %v193 = vsel %vm191, %v184, 0
    %195 = vmatprep.subr.bf16.mxu0 0
    %196 = vmatpush1.bf16.msra.mxu0 0
    %197 = vmatprep.subr.bf16.mxu0 0
    %198 = vmatpush1.bf16.msra.mxu0 0
    %199 = vmatprep.subr.bf16.mxu0 0
    %200 = vmatpush1.bf16.msra.mxu0 0
    %201 = vmatprep.subr.bf16.mxu0 0
    %202 = vmatpush1.bf16.msra.mxu0 0
    %203 = vmatprep.subr.bf16.mxu0 0
    %204 = vmatpush1.bf16.msra.mxu0 0
    %205 = vmatprep.subr.bf16.mxu0 0
    %206 = vmatpush1.bf16.msra.mxu0 0
    %207 = vmatprep.subr.bf16.mxu0 0
    %208 = vmatpush1.bf16.msra.mxu0 0
    %209 = vmatprep.subr.bf16.mxu0 0
    %210 = vmatpush1.bf16.msra.mxu0 %v189
    %211 = vmatprep.subr.bf16.mxu0 0
    %212 = vmatpush2.bf16.msra.mxu0 0
    %213 = vmatprep.subr.bf16.mxu0 0
    %214 = vmatpush2.bf16.msra.mxu0 0
    %215 = vmatprep.subr.bf16.mxu0 0
    %216 = vmatpush2.bf16.msra.mxu0 0
    %217 = vmatprep.subr.bf16.mxu0 0
    %218 = vmatpush2.bf16.msra.mxu0 0
    %219 = vmatprep.subr.bf16.mxu0 0
    %220 = vmatpush2.bf16.msra.mxu0 0
    %221 = vmatprep.subr.bf16.mxu0 0
    %222 = vmatpush2.bf16.msra.mxu0 0
    %223 = vmatprep.subr.bf16.mxu0 0
    %224 = vmatpush2.bf16.msra.mxu0 0
    %225 = vmatprep.subr.bf16.mxu0 0
    %226 = vmatpush2.bf16.msra.mxu0 0
    %227 = vmatprep.mubr.bf16.mxu0 0
    %228 = vmatmul.mubr.bf16.gmra.mxu0 %v193
    %v229 = vpop.f32.mrf.mxu0
    %v230 = vadd.f32 0.0, %v229
    %v231 = vpop.f32.mrf.mxu0
    %v232 = vpop.f32.mrf.mxu0
    %v233 = vadd.f32 0.0, %v232
    %v234 = vpop.f32.mrf.mxu0
    %235 = vdwg.mxu0
    %v236 = vpack.c.bf16 %v233, %v230
    %v253 = vunpack.c.l.b16 %v162
    %v254 = vunpack.c.l.b16 %v163
    %v255 = vunpack.c.l.b16 %v164
    %v256 = vunpack.c.l.b16 %v165
    %v257 = vunpack.c.l.b16 %v166
    %v258 = vunpack.c.l.b16 %v167
    %v259 = vunpack.c.l.b16 %v168
    %v260 = vunpack.c.l.b16 %v169
    %v261 = vunpack.c.l.b16 %v170
    %v262 = vunpack.c.l.b16 %v171
    %v263 = vunpack.c.l.b16 %v172
    %v264 = vunpack.c.l.b16 %v173
    %v265 = vunpack.c.l.b16 %v174
    %v266 = vunpack.c.l.b16 %v175
    %v267 = vunpack.c.l.b16 %v176
    %v268 = vunpack.c.l.b16 %v177
    %v269 = vpack.c.b16 %v254, %v253
    %v270 = vpack.c.b16 %v256, %v255
    %v271 = vpack.c.b16 %v258, %v257
    %v272 = vpack.c.b16 %v260, %v259
    %v273 = vpack.c.b16 %v262, %v261
    %v274 = vpack.c.b16 %v264, %v263
    %v275 = vpack.c.b16 %v266, %v265
    %v276 = vpack.c.b16 %v268, %v267
    %285 = vmatprep.subr.bf16.mxu0 0
    %286 = vmatpush1.bf16.msra.mxu0 %v276
    %287 = vmatprep.subr.bf16.mxu0 0
    %288 = vmatpush1.bf16.msra.mxu0 %v275
    %289 = vmatprep.subr.bf16.mxu0 0
    %290 = vmatpush1.bf16.msra.mxu0 %v274
    %291 = vmatprep.subr.bf16.mxu0 0
    %292 = vmatpush1.bf16.msra.mxu0 %v273
    %293 = vmatprep.subr.bf16.mxu0 0
    %294 = vmatpush1.bf16.msra.mxu0 %v272
    %295 = vmatprep.subr.bf16.mxu0 0
    %296 = vmatpush1.bf16.msra.mxu0 %v271
    %297 = vmatprep.subr.bf16.mxu0 0
    %298 = vmatpush1.bf16.msra.mxu0 %v270
    %299 = vmatprep.subr.bf16.mxu0 0
    %300 = vmatpush1.bf16.msra.mxu0 %v269
    %301 = vmatprep.subr.bf16.mxu0 0
    %302 = vmatpush2.bf16.msra.mxu0 0
    %303 = vmatprep.subr.bf16.mxu0 0
    %304 = vmatpush2.bf16.msra.mxu0 0
    %305 = vmatprep.subr.bf16.mxu0 0
    %306 = vmatpush2.bf16.msra.mxu0 0
    %307 = vmatprep.subr.bf16.mxu0 0
    %308 = vmatpush2.bf16.msra.mxu0 0
    %309 = vmatprep.subr.bf16.mxu0 0
    %310 = vmatpush2.bf16.msra.mxu0 0
    %311 = vmatprep.subr.bf16.mxu0 0
    %312 = vmatpush2.bf16.msra.mxu0 0
    %313 = vmatprep.subr.bf16.mxu0 0
    %314 = vmatpush2.bf16.msra.mxu0 0
    %315 = vmatprep.subr.bf16.mxu0 0
    %316 = vmatpush2.bf16.msra.mxu0 0
    %317 = vmatprep.mubr.bf16.mxu0 0
    %318 = vmatmul.mubr.bf16.gmra.mxu0 %v236
    %v319 = vpop.f32.mrf.mxu0
    %v320 = vadd.f32 0.0, %v319
    %v321 = vpop.f32.mrf.mxu0
    %v322 = vpop.f32.mrf.mxu0
    %v323 = vadd.f32 0.0, %v322
    %v324 = vpop.f32.mrf.mxu0
    %325 = vdwg.mxu0
    %326 = vst.msk [vmem:[#allocation9] sm:$0xff] %vm191, %v320
    %327 = vst.msk [vmem:[#allocation9 + $0x8] sm:$0xff] %vm191, %v323
    %330 = vrot.lane.b32.xlu0 %v320, 112
    %v331 = vpop.permute.xlu0 %330
    %332 = vrot.lane.b32.xlu0 %v323, 112
    %v333 = vpop.permute.xlu0 %332
    %s336 = scalar_lea.vmem [#allocation9], 16
    %337 = vst.msk [vmem:[%s336] sm:$0xff] %vm191, %v331
    %338 = vst.msk [vmem:[%s336 + $0x8] sm:$0xff] %vm191, %v333
    %339 = vrot.lane.b32.xlu0 %v320, 96
    %v340 = vpop.permute.xlu0 %339
    %341 = vrot.lane.b32.xlu0 %v323, 96
    %v342 = vpop.permute.xlu0 %341
    %s345 = scalar_lea.vmem [#allocation9], 32
    %346 = vst.msk [vmem:[%s345] sm:$0xff] %vm191, %v340
    %347 = vst.msk [vmem:[%s345 + $0x8] sm:$0xff] %vm191, %v342
    %348 = vrot.lane.b32.xlu0 %v320, 80
    %v349 = vpop.permute.xlu0 %348
    %350 = vrot.lane.b32.xlu0 %v323, 80
    %v351 = vpop.permute.xlu0 %350
    %s354 = scalar_lea.vmem [#allocation9], 48
    %355 = vst.msk [vmem:[%s354] sm:$0xff] %vm191, %v349
    %356 = vst.msk [vmem:[%s354 + $0x8] sm:$0xff] %vm191, %v351
    %357 = vrot.lane.b32.xlu0 %v320, 64
    %v358 = vpop.permute.xlu0 %357
    %359 = vrot.lane.b32.xlu0 %v323, 64
    %v360 = vpop.permute.xlu0 %359
    %s363 = scalar_lea.vmem [#allocation9], 64
    %364 = vst.msk [vmem:[%s363] sm:$0xff] %vm191, %v358
    %365 = vst.msk [vmem:[%s363 + $0x8] sm:$0xff] %vm191, %v360
    %366 = vrot.lane.b32.xlu0 %v320, 48
    %v367 = vpop.permute.xlu0 %366
    %368 = vrot.lane.b32.xlu0 %v323, 48
    %v369 = vpop.permute.xlu0 %368
    %s372 = scalar_lea.vmem [#allocation9], 80
    %373 = vst.msk [vmem:[%s372] sm:$0xff] %vm191, %v367
    %374 = vst.msk [vmem:[%s372 + $0x8] sm:$0xff] %vm191, %v369
    %375 = vrot.lane.b32.xlu0 %v320, 32
    %v376 = vpop.permute.xlu0 %375
    %377 = vrot.lane.b32.xlu0 %v323, 32
    %v378 = vpop.permute.xlu0 %377
    %s381 = scalar_lea.vmem [#allocation9], 96
    %382 = vst.msk [vmem:[%s381] sm:$0xff] %vm191, %v376
    %383 = vst.msk [vmem:[%s381 + $0x8] sm:$0xff] %vm191, %v378
    %384 = vrot.lane.b32.xlu0 %v320, 16
    %v385 = vpop.permute.xlu0 %384
    %386 = vrot.lane.b32.xlu0 %v323, 16
    %v387 = vpop.permute.xlu0 %386
    %s390 = scalar_lea.vmem [#allocation9], 112
    %391 = vst.msk [vmem:[%s390] sm:$0xff] %vm191, %v385
    %392 = vst.msk [vmem:[%s390 + $0x8] sm:$0xff] %vm191, %v387
    // Predicated region
    $region26: #{tpu_custom_call.1} parent=1 // pred_check
      _
    $region27: #{tpu_custom_call.1} parent=1 // pred_check_branch
      %394 = sbr.rel (0) target = $region29
    $region28: #{tpu_custom_call.1} parent=1 // pred_region
      %s396 = ssub.s32 2048, 2048
      %397 = vsyncadd [#allocation5], %s396
      %s398 = sshll.u32 [#allocation9], 4
      %s399 = int_to_ptr.vmem [resolvable:$true] %s398
      %404 = dma.vmem_to_hbm [thread:$0]  %s399, 2048, %s3, [#allocation5], 128, 128, 8
    $region29: #{tpu_custom_call.1} parent=1 // pred_fallthru
      _
    // Predicated region
    $region30: #{tpu_custom_call.1} parent=1 // pred_check
      _
    $region31: #{tpu_custom_call.1} parent=1 // pred_check_branch
      %406 = sbr.rel (0) target = $region33
    $region32: #{tpu_custom_call.1} parent=1 // pred_region
      %407 = dma.done [#allocation5], 2048
    $region33: #{tpu_custom_call.1} parent=1 // pred_fallthru
      _
    %408 = vsyncpa [#allocation4], 1
    %409 = vsyncpa [#allocation7], 1
    %410 = vsyncpa [#allocation5], 1

</llo_original>
